<compile_context>
chip_gen: v7x
topology: tpu7x:2x2x1
jax: 0.10.0
libtpu: 0.0.40
codegen_flags: <defaults>
</compile_context>

<pallas_src>
import jax
import jax.numpy as jnp
from jax.experimental import pallas as pl
from jax.experimental.pallas import tpu as pltpu

LANES = 128           # vreg lane width
SUBL = 32             # row-tile granularity valid for f32/bf16/int8 packing

_SMALL_BYTES = 1 << 20          # below this, let XLA fuse the multiply
_TARGET_TILE_BYTES = 4 << 20    # soft per-stream tile target (~4 MiB)
_MAX_TILE_BYTES = 6 << 20       # hard per-stream tile cap (~6 MiB)
_VMEM_LIMIT_BYTES = 32 << 20    # 2 streams x 2 buffers x <=6 MiB + headroom


def _round_up(v, m):
    return ((v + m - 1) // m) * m


def _scale_kernel(scale_ref, x_ref, o_ref):
    # scale_ref: SMEM, shape (1,), float32
    # x_ref / o_ref: VMEM tile, shape (tile_r, tile_c)
    # The f32 scalar promotes the product to f32; cast back explicitly so
    # narrower dtypes (e.g. bf16) store cleanly.
    o_ref[...] = (x_ref[...] * scale_ref[0]).astype(o_ref.dtype)


def _choose_2d_view(shape, n):
    """Pick a free (contiguous) 2-D view (R, C) of the flattened tensor."""
    if n % LANES == 0:
        return n // LANES, LANES          # lane-dense: best store efficiency
    # Unaligned: keep a product of trailing dims whole as the lane dim.
    # A block whose lane dim equals the full array dim waives the 128 rule,
    # so no padding / extra HBM pass is ever needed.
    c = 1
    for d in reversed(shape):
        c *= int(d)
        if c >= 2 * LANES:                # keep lanes reasonably dense
            break
    return n // c, c


def _pick_tiles(rows, cols, itemsize):
    """Choose (tile_r, tile_c) obeying TPU block rules and the VMEM budget."""
    row_bytes = cols * itemsize

    # --- Case A: lane dim kept whole (tile_c == cols); block rows only. ---
    if rows <= SUBL:
        if rows * row_bytes <= _MAX_TILE_BYTES:
            return rows, cols             # whole array in one tile (full dims)
    elif SUBL * row_bytes <= _MAX_TILE_BYTES:
        max_r = (_MAX_TILE_BYTES // row_bytes) // SUBL * SUBL       # >= SUBL
        # Soft target tile, but always >= 2 blocks so the "parallel" grid
        # axis can shard across v7x's two TensorCores.
        tgt_r = min(_TARGET_TILE_BYTES // row_bytes, pl.cdiv(rows, 2))
        tile_r = min(max_r,
                     (rows // SUBL) * SUBL,
                     max(SUBL, (tgt_r // SUBL) * SUBL))
        # Best effort: even-out short odd grids for balanced 2-TC work.
        g = pl.cdiv(rows, tile_r)
        if 2 < g <= 9 and g % 2 == 1:
            tile_r = min(tile_r,
                         max(SUBL, _round_up(pl.cdiv(rows, g + 1), SUBL)))
        return tile_r, cols

    # --- Case B: rows are huge (lane dim too wide); block both dims. ---
    tile_r = rows if rows <= SUBL else SUBL
    lane_budget = max(LANES, _TARGET_TILE_BYTES // (tile_r * itemsize))
    tile_c = max(LANES, (lane_budget // LANES) * LANES)   # multiple of 128
    return tile_r, tile_c


def scale_forward(x, scale, *, min_pallas_bytes=_SMALL_BYTES,
                  donate_input=False):
    """Elementwise x * scale (learnable scalar) via a tiled Pallas TPU kernel.

    x:     arbitrary-shape float array (e.g. NCHW activations)
    scale: shape-(1,) float32 parameter
    """
    orig_shape = x.shape
    orig_dtype = x.dtype
    n = x.size
    itemsize = jnp.dtype(orig_dtype).itemsize
    total_bytes = n * itemsize

    scale = jnp.asarray(scale, jnp.float32).reshape(-1)

    if not jnp.issubdtype(orig_dtype, jnp.floating):
        # TODO(synk): integer inputs follow jnp type promotion (float output),
        # matching PyTorch's int*float behavior; the Pallas path below only
        # handles floating dtypes.
        return x * scale[0]

    if total_bytes <= min_pallas_bytes:
        # Tiny tensors: custom-call launch overhead dominates; let XLA fuse.
        return (x * scale[0]).astype(orig_dtype)

    rows, cols = _choose_2d_view(orig_shape, n)
    x2d = x.reshape(rows, cols)                      # free (contiguous) view
    tile_r, tile_c = _pick_tiles(rows, cols, itemsize)
    grid = (pl.cdiv(rows, tile_r), pl.cdiv(cols, tile_c))

    cost = pl.CostEstimate(
        flops=n,
        transcendentals=0,
        bytes_accessed=2 * n * itemsize + 4,         # read x + write out + scale
    )

    extra = {}
    if donate_input:
        # Alias x2d (input index 1) to the output: halves HBM footprint when
        # the caller donates x.
        extra["input_output_aliases"] = {1: 0}

    out2d = pl.pallas_call(
        _scale_kernel,
        out_shape=jax.ShapeDtypeStruct((rows, cols), orig_dtype),
        grid_spec=pltpu.PrefetchScalarGridSpec(
            num_scalar_prefetch=0,
            grid=grid,
            in_specs=[
                pl.BlockSpec(memory_space=pltpu.MemorySpace.SMEM),   # scale
                pl.BlockSpec((tile_r, tile_c), lambda i, j: (i, j)),  # x tile
            ],
            out_specs=pl.BlockSpec((tile_r, tile_c), lambda i, j: (i, j)),
        ),
        compiler_params=pltpu.CompilerParams(
            dimension_semantics=("parallel", "parallel"),
            vmem_limit_bytes=_VMEM_LIMIT_BYTES,
        ),
        cost_estimate=cost,
        **extra,
    )(scale, x2d)

    return out2d.reshape(orig_shape)


if __name__ == "__main__":
    key = jax.random.PRNGKey(0)

    # Deterministic "learnable" scalar (non-trivial so the multiply is real).
    scale = jnp.array([1.0], dtype=jnp.float32) * 0.731

    # 1) Spec-sized NCHW input (2,4,16,16): default path (small-input XLA fast
    #    path) and the forced Pallas path must both match the reference.
    x = jax.random.normal(key, (2, 4, 16, 16), dtype=jnp.float32)
    ref = x * scale[0]
    out_fast = jax.block_until_ready(scale_forward(x, scale))
    out_krnl = jax.block_until_ready(
        scale_forward(x, scale, min_pallas_bytes=0))
    assert out_krnl.shape == x.shape and out_krnl.dtype == x.dtype
    assert jnp.allclose(out_fast, ref, atol=1e-6, rtol=1e-6)
    assert jnp.allclose(out_krnl, ref, atol=1e-6, rtol=1e-6)

    # 2) Non-128-aligned shape through the kernel: no pad / slice passes,
    #    trailing dims kept whole in the block.
    k2 = jax.random.PRNGKey(1)
    x2 = jax.random.normal(k2, (3, 5, 17, 19), dtype=jnp.float32)
    out2 = jax.block_until_ready(scale_forward(x2, scale, min_pallas_bytes=0))
    assert out2.shape == x2.shape
    assert jnp.allclose(out2, x2 * scale[0], atol=1e-6, rtol=1e-6)

    # 3) bf16 input through the kernel: dtype-safe cast on store.
    x3 = jax.random.normal(key, (2, 4, 16, 16), dtype=jnp.bfloat16)
    out3 = jax.block_until_ready(scale_forward(x3, scale, min_pallas_bytes=0))
    ref3 = (x3 * scale[0]).astype(jnp.bfloat16)
    assert out3.dtype == jnp.bfloat16
    assert jnp.allclose(out3.astype(jnp.float32), ref3.astype(jnp.float32),
                        atol=1e-2, rtol=1e-2)

    # 4) Moderately larger aligned tensor (2 MiB): exercises the real tiled,
    #    multi-block, big-tile path by default.
    k4 = jax.random.PRNGKey(2)
    x4 = jax.random.normal(k4, (2, 16, 128, 128), dtype=jnp.float32)
    out4 = jax.block_until_ready(scale_forward(x4, scale))
    assert jnp.allclose(out4, x4 * scale[0], atol=1e-6, rtol=1e-6)

    print("KERNEL_OK")
</pallas_src>

<mosaic_0001>
module attributes {stable_mosaic.version = 11 : i64} {
  func.func @_scale_kernel(%arg0: i32, %arg1: i32, %arg2: memref<1xf32, #tpu.memory_space<smem>>, %arg3: memref<16x128xf32, #tpu.memory_space<vmem>>, %arg4: memref<16x128xf32, #tpu.memory_space<vmem>>) attributes {dimension_semantics = [#tpu.dimension_semantics<parallel>, #tpu.dimension_semantics<parallel>], iteration_bounds = array<i64: 1, 1>, scalar_prefetch = 0 : i64, scratch_operands = 0 : i64, tpu.core_type = #tpu.core_type<tc>, window_params = [{transform_indices = @transform_0, window_bounds = array<i64: 1>}, {transform_indices = @transform_1, window_bounds = array<i64: 16, 128>}, {transform_indices = @transform_2, window_bounds = array<i64: 16, 128>}]} {
    %c0 = arith.constant 0 : index
    %c0_0 = arith.constant 0 : index
    %0 = vector.load %arg3[%c0, %c0_0] : memref<16x128xf32, #tpu.memory_space<vmem>>, vector<16x128xf32>
    %c0_1 = arith.constant 0 : index
    %1 = memref.load %arg2[%c0_1] : memref<1xf32, #tpu.memory_space<smem>>
    %2 = vector.broadcast %1 : f32 to vector<16x128xf32>
    %3 = arith.mulf %0, %2 : vector<16x128xf32>
    %c0_2 = arith.constant 0 : index
    %c0_3 = arith.constant 0 : index
    %4 = vector.load %arg4[%c0_2, %c0_3] : memref<16x128xf32, #tpu.memory_space<vmem>>, vector<16x128xf32>
    tpu.vector_store %arg4[%c0_2, %c0_3], %3 {strides = array<i32>} : memref<16x128xf32, #tpu.memory_space<vmem>>, vector<16x128xf32>,
    return
  }
  func.func @transform_0(%arg0: i32, %arg1: i32) -> i32 {
    %c0_i32 = arith.constant 0 : i32
    %c0_i32_0 = arith.constant 0 : i32
    return %c0_i32 : i32
  }
  func.func @transform_1(%arg0: i32, %arg1: i32) -> (i32, i32) {
    %c0_i32 = arith.constant 0 : i32
    return %arg0, %arg1 : i32, i32
  }
  func.func @transform_2(%arg0: i32, %arg1: i32) -> (i32, i32) {
    %c0_i32 = arith.constant 0 : i32
    return %arg0, %arg1 : i32, i32
  }
}

</mosaic_0001>

<llo_original>
// kernel: tpu_custom_call.1
$region0: #{tpu_custom_call.1}
  #allocation0 [shape = 'u32[]', space=smem, size = 0x4, offset = 0x4, fixed_abs, tag = 'smem constant byte address 0x4 - core index']
  #allocation1 [shape = 'u32[144,128]{1,0:T(1,128)}', space=vmem, size = 0x12000, scoped, tag = 'internal scratch']
  #allocation2 [shape = 'f32[1]{0:T(128)S(6)}', space=smem, size = 0x200, scoped, tag = 'scoped memory for tpu_custom_call.1']
  %s0 = inlined_call_operand.<no memory space> [shape: f32[1], index: 0, kind: input, shape index: {}]
  %s1 = inlined_call_operand.hbm [shape: f32[16,128], index: 1, kind: input, shape index: {}]
  %s2 = inlined_call_operand.hbm [shape: f32[16,128], index: 2, kind: output, shape index: {}]
  %s3 = sld [smem:[#allocation0]]
  $region22: #{tpu_custom_call.1} parent=0
    _
  %s5 = ssub.s32 1, %s3
  %s6 = scalar_select 0, %s5, %s3
  %7 = sst [smem:[#allocation2]] %s0
  $region1: #{tpu_custom_call.1} parent=0
    #allocation3 [shape = 'u8[8192]{0}', space=vmem, size = 0x2000, scoped, tag = 'input window, operand 1, single buffered']
    #allocation4 [shape = 's32[1]{0}', space=sflag, size = 0x4, scoped, tag = 'scoped memory for tpu_custom_call.1']
    #allocation5 [shape = 's32[1]{0}', space=sflag, size = 0x4, scoped, tag = 'scoped memory for tpu_custom_call.1']
    #allocation6 [shape = 'u8[8192]{0}', space=vmem, size = 0x2000, scoped, tag = 'output window, operand 0, single buffered']
    %8 = vsyncpa [#allocation4], 0
    %9 = vsyncpa [#allocation5], 0
    // Predicated region
    $region2: #{tpu_custom_call.1} parent=1 // pred_check
      _
    $region3: #{tpu_custom_call.1} parent=1 // pred_check_branch
      %11 = sbr.rel (0) target = $region5
    $region4: #{tpu_custom_call.1} parent=1 // pred_region
      _
    $region5: #{tpu_custom_call.1} parent=1 // pred_fallthru
      _
    // Predicated region
    $region6: #{tpu_custom_call.1} parent=1 // pred_check
      _
    $region7: #{tpu_custom_call.1} parent=1 // pred_check_branch
      %13 = sbr.rel (0) target = $region9
    $region8: #{tpu_custom_call.1} parent=1 // pred_region
      %s15 = ssub.s32 256, 256
      %16 = vsyncadd [#allocation4], %s15
      %s17 = sshll.u32 [#allocation3], 4
      %s18 = int_to_ptr.vmem [resolvable:$true] %s17
      %23 = dma.hbm_to_vmem [thread:$0]  %s1, 256, %s18, [#allocation4], 128, 128, 8
    $region9: #{tpu_custom_call.1} parent=1 // pred_fallthru
      _
    // Predicated region
    $region10: #{tpu_custom_call.1} parent=1 // pred_check
      _
    $region11: #{tpu_custom_call.1} parent=1 // pred_check_branch
      %25 = sbr.rel (0) target = $region13
    $region12: #{tpu_custom_call.1} parent=1 // pred_region
      %26 = dma.done [#allocation4], 256
    $region13: #{tpu_custom_call.1} parent=1 // pred_fallthru
      _
    %v27 = vld [vmem:[#allocation3] sm:$0xff]
    %v28 = vld [vmem:[#allocation3 + $0x8] sm:$0xff]
    %s29 = sld [smem:[#allocation2]]
    %v30 = vstv %s29
    %v31 = vmul.f32 %v27, %v30
    %v32 = vmul.f32 %v28, %v30
    %33 = vst [vmem:[#allocation6] sm:$0xff] %v31
    %34 = vst [vmem:[#allocation6 + $0x8] sm:$0xff] %v32
    // Predicated region
    $region14: #{tpu_custom_call.1} parent=1 // pred_check
      _
    $region15: #{tpu_custom_call.1} parent=1 // pred_check_branch
      %36 = sbr.rel (0) target = $region17
    $region16: #{tpu_custom_call.1} parent=1 // pred_region
      %s38 = ssub.s32 256, 256
      %39 = vsyncadd [#allocation5], %s38
      %s40 = sshll.u32 [#allocation6], 4
      %s41 = int_to_ptr.vmem [resolvable:$true] %s40
      %46 = dma.vmem_to_hbm [thread:$0]  %s41, 256, %s2, [#allocation5], 128, 128, 8
    $region17: #{tpu_custom_call.1} parent=1 // pred_fallthru
      _
    // Predicated region
    $region18: #{tpu_custom_call.1} parent=1 // pred_check
      _
    $region19: #{tpu_custom_call.1} parent=1 // pred_check_branch
      %48 = sbr.rel (0) target = $region21
    $region20: #{tpu_custom_call.1} parent=1 // pred_region
      %49 = dma.done [#allocation5], 256
    $region21: #{tpu_custom_call.1} parent=1 // pred_fallthru
      _
    %50 = vsyncpa [#allocation4], 1
    %51 = vsyncpa [#allocation5], 1

</llo_original>
